<compile_context>
chip_gen: v6e
topology: v6e:2x2x1
jax: 0.10.0
libtpu: 0.0.40
codegen_flags: <defaults>
</compile_context>

<pallas_src>
import functools

import jax
import jax.numpy as jnp
from jax.experimental import pallas as pl
from jax.experimental.pallas import tpu as pltpu


def _make_head_kernel(inv_hw):
    """Fused global-avg-pool + encoder_fc + (age, sex) heads.

    Grid = (batch tiles [parallel], channel tiles [arbitrary/reduction]).
    """

    def kernel(feat_ref,          # (tn, tc, HW)  encoder features (bf16)
               wfc_ref,           # (tc, Z)       encoder_fc weight rows of this C chunk
               bfc_ref,           # (1, Z)        encoder_fc bias
               w1_ref, b1_ref,    # (Z, 2H), (1, 2H)    fused [age | sex] layer 1
               p_ref,             # (Z, OUT_W)    identity pass-through for latent
               w2_ref, b2_ref,    # (2H, OUT_W), (1, OUT_W)  fused, lane-padded layer 2
               out_ref,           # (tn, OUT_W)   packed [latent | y1 | y2 | 0]
               lat_acc):          # VMEM (tn, Z)  f32 latent accumulator
        k = pl.program_id(1)

        @pl.when(k == 0)
        def _init():
            lat_acc[...] = jnp.zeros_like(lat_acc)

        # Stream this (tn, tc, HW) tile; upcast to f32 before reducing (v5e's
        # VPU has no bf16; accumulation must be f32 for accuracy anyway).
        feat = feat_ref[...].astype(jnp.float32)
        pooled = jnp.sum(feat, axis=-1) * inv_hw              # (tn, tc)
        # Fold this channel chunk straight into the latent accumulator:
        # latent += pooled_chunk @ w_fc[chunk_rows, :]
        lat_acc[...] += jnp.dot(pooled, wfc_ref[...],
                                preferred_element_type=jnp.float32)

        @pl.when(k == pl.num_programs(1) - 1)
        def _finalize():
            latent = lat_acc[...] + bfc_ref[...]              # (tn, Z)
            # Fused age/sex first layers; Dropout is eval-mode identity.
            h = jnp.maximum(
                jnp.dot(latent, w1_ref[...],
                        preferred_element_type=jnp.float32) + b1_ref[...],
                0.0)                                          # (tn, 2H)
            # One lane-dense, unmasked (tn, OUT_W) store:
            #   cols [0:Z)     -> latent_code  (identity pass-through P)
            #   col  Z         -> y1_hat (age)
            #   cols [Z+1:Z+3) -> y2_hat (sex)
            out_ref[...] = (
                jnp.dot(latent, p_ref[...], preferred_element_type=jnp.float32)
                + jnp.dot(h, w2_ref[...], preferred_element_type=jnp.float32)
                + b2_ref[...])

    return kernel


def init_params(key, c_feat, z_common=24, z_age=12, z_sex=12, hidden=256):
    """Deterministic PyTorch-Linear-style init: W is (out, in), b is (out,)."""
    z_dim = z_common + z_age + z_sex

    def lin(k, out_d, in_d):
        kw, kb = jax.random.split(k)
        bound = 1.0 / jnp.sqrt(jnp.float32(in_d))
        w = jax.random.uniform(kw, (out_d, in_d), jnp.float32, -bound, bound)
        b = jax.random.uniform(kb, (out_d,), jnp.float32, -bound, bound)
        return w, b

    k = jax.random.split(key, 5)
    w_fc, b_fc = lin(k[0], z_dim, c_feat)      # encoder_fc
    w_a1, b_a1 = lin(k[1], hidden, z_age)      # age_regresser[0]
    w_a2, b_a2 = lin(k[2], 1, hidden)          # age_regresser[3]
    w_s1, b_s1 = lin(k[3], hidden, z_sex)      # sex_classifier[0]
    w_s2, b_s2 = lin(k[4], 2, hidden)          # sex_classifier[3]
    return dict(w_fc=w_fc, b_fc=b_fc, w_a1=w_a1, b_a1=b_a1, w_a2=w_a2,
                b_a2=b_a2, w_s1=w_s1, b_s1=b_s1, w_s2=w_s2, b_s2=b_s2)


def cxr_autoencoder2_heads(feat_nchw, params, *, z_age=12, z_sex=12,
                           tile_n=8, tile_c=128,
                           feat_dtype=jnp.bfloat16):
    """Runs the fused Pallas kernel. feat_nchw: (N, C, H, W) encoder features."""
    N, C, H, W = feat_nchw.shape
    HW = H * W
    z_dim = params["w_fc"].shape[0]
    hidden = params["w_a1"].shape[0]
    H2 = 2 * hidden
    # Packed lane-dense output width: [latent | y1 | y2 | zero-pad] -> x128.
    OUT_W = max(128, -(-(z_dim + 3) // 128) * 128)

    # --- tile selection --------------------------------------------------
    # feat tile = (tile_n, tile_c, HW); with realistic resnet18 shapes
    # (C=512, HW=196) and defaults this is ~0.4 MB bf16 per step, so the
    # double-buffered pipeline stays far under the scoped-VMEM default on
    # every generation (16 MiB v5e, 32 MiB v6e/v7x).
    if tile_n is None or tile_n >= N or N % tile_n != 0 or tile_n % 8 != 0:
        tile_n = N                      # out block 2nd-to-last dim constraint
    if tile_c is None or tile_c >= C or C % tile_c != 0 or tile_c % 8 != 0:
        tile_c = C                      # fall back to un-tiled channel axis
    grid = (N // tile_n, C // tile_c)

    # --- glue: weight prep (all tiny, done once in XLA) -------------------
    # NOTE: ideally the encoder emits bf16 NC(HW) directly; this cast/reshape
    # is glue for the standalone demo.
    feat = feat_nchw.reshape(N, C, HW).astype(feat_dtype)

    wfc_t = params["w_fc"].T.astype(jnp.float32)                     # (C, Z)
    bfc = params["b_fc"][None, :].astype(jnp.float32)                # (1, Z)

    # Fused first layer: [age | sex] hidden units side by side; latent slicing
    # (latent[:, :z_age] / latent[:, z_age:z_age+z_sex]) folded into zero rows.
    w1 = jnp.zeros((z_dim, H2), jnp.float32)
    w1 = w1.at[:z_age, :hidden].set(params["w_a1"].T)
    w1 = w1.at[z_age:z_age + z_sex, hidden:].set(params["w_s1"].T)
    b1 = jnp.concatenate([params["b_a1"], params["b_s1"]])[None, :]
    b1 = b1.astype(jnp.float32)                                      # (1, 2H)

    # Latent identity pass-through + fused block-diagonal second layer, both
    # padded to the lane-dense OUT_W output slab.
    p_lat = jnp.zeros((z_dim, OUT_W), jnp.float32)
    p_lat = p_lat.at[:, :z_dim].set(jnp.eye(z_dim, dtype=jnp.float32))
    w2 = jnp.zeros((H2, OUT_W), jnp.float32)
    w2 = w2.at[:hidden, z_dim:z_dim + 1].set(params["w_a2"].T)
    w2 = w2.at[hidden:, z_dim + 1:z_dim + 3].set(params["w_s2"].T)
    b2 = jnp.zeros((1, OUT_W), jnp.float32)
    b2 = b2.at[0, z_dim:z_dim + 1].set(params["b_a2"])
    b2 = b2.at[0, z_dim + 1:z_dim + 3].set(params["b_s2"])

    inputs = (feat, wfc_t, bfc, w1, b1, p_lat, w2, b2)

    in_specs = [
        pl.BlockSpec((tile_n, tile_c, HW), lambda i, k: (i, k, 0)),   # feat stream
        pl.BlockSpec((tile_c, z_dim), lambda i, k: (k, 0)),           # w_fc rows
        pl.BlockSpec((1, z_dim), lambda i, k: (0, 0)),                # b_fc (resident)
        pl.BlockSpec((z_dim, H2), lambda i, k: (0, 0)),               # w1 fused
        pl.BlockSpec((1, H2), lambda i, k: (0, 0)),                   # b1 fused
        pl.BlockSpec((z_dim, OUT_W), lambda i, k: (0, 0)),            # latent pass-through
        pl.BlockSpec((H2, OUT_W), lambda i, k: (0, 0)),               # w2 fused
        pl.BlockSpec((1, OUT_W), lambda i, k: (0, 0)),                # b2 fused
    ]
    out_specs = pl.BlockSpec((tile_n, OUT_W), lambda i, k: (i, 0))
    out_shape = jax.ShapeDtypeStruct((N, OUT_W), jnp.float32)

    # Advisory cost hint: this op is bandwidth, not flops.
    param_bytes = sum(int(a.size) * a.dtype.itemsize for a in inputs[1:])
    bytes_accessed = (int(feat.size) * feat.dtype.itemsize
                      + param_bytes + N * OUT_W * 4)
    flops = (2 * N * C * HW                 # pooling reduction
             + 2 * N * C * z_dim            # pooled @ w_fc
             + 2 * N * z_dim * H2           # fused head layer 1
             + 2 * N * H2 * OUT_W           # fused head layer 2
             + 2 * N * z_dim * OUT_W)       # latent pass-through
    cost = pl.CostEstimate(flops=flops, transcendentals=0,
                           bytes_accessed=bytes_accessed)

    packed = pl.pallas_call(
        _make_head_kernel(1.0 / HW),
        out_shape=out_shape,
        grid_spec=pltpu.PrefetchScalarGridSpec(
            num_scalar_prefetch=0,
            grid=grid,
            in_specs=in_specs,
            out_specs=out_specs,
            scratch_shapes=[pltpu.VMEM((tile_n, z_dim), jnp.float32)]),
        compiler_params=pltpu.CompilerParams(
            dimension_semantics=("parallel", "arbitrary")),
        cost_estimate=cost,
    )(*inputs)

    latent = packed[:, :z_dim]
    y1 = packed[:, z_dim:z_dim + 1]
    y2 = packed[:, z_dim + 1:z_dim + 3]
    # TODO(synk): x_hat = ResDeconv(latent_code) omitted (module not provided).
    return {"latent_code": latent, "y1_hat": y1, "y2_hat": y2}


def reference_heads(feat_nchw, params, *, z_age=12, z_sex=12):
    """Pure-JAX reference mirroring the PyTorch forward (eval-mode dropout)."""
    pooled = feat_nchw.mean(-1).mean(-1)
    latent = pooled @ params["w_fc"].T + params["b_fc"]
    ha = jax.nn.relu(latent[:, :z_age] @ params["w_a1"].T + params["b_a1"])
    y1 = ha @ params["w_a2"].T + params["b_a2"]
    hs = jax.nn.relu(
        latent[:, z_age:z_age + z_sex] @ params["w_s1"].T + params["b_s1"])
    y2 = hs @ params["w_s2"].T + params["b_s2"]
    return latent, y1, y2


if __name__ == "__main__":
    # Small, deterministic example shapes:
    #   batch=2, bottleneck channels=64 (stand-in for resnet18's 512),
    #   bottleneck spatial 8x8 (stand-in for 448/32 = 14).
    N, C_FEAT, HF, WF = 2, 64, 8, 8
    Z_COMMON, Z_AGE, Z_SEX = 24, 12, 12

    key = jax.random.PRNGKey(0)
    k_feat, k_params = jax.random.split(key)
    feat = jax.random.normal(k_feat, (N, C_FEAT, HF, WF), jnp.float32)
    params = init_params(k_params, C_FEAT, Z_COMMON, Z_AGE, Z_SEX)

    # tile_c=32 -> 2 reduction steps over the channel axis (exercises the
    # init/accumulate/finalize pipeline even at these tiny demo shapes).
    out = cxr_autoencoder2_heads(feat, params, z_age=Z_AGE, z_sex=Z_SEX,
                                 tile_n=None, tile_c=32)
    jax.block_until_ready(out)

    # Reference uses the same bf16-quantized features the kernel streams
    # (accumulation on both sides is f32).
    feat_q = feat.astype(jnp.bfloat16).astype(jnp.float32)
    lat_ref, y1_ref, y2_ref = reference_heads(feat_q, params,
                                              z_age=Z_AGE, z_sex=Z_SEX)
    assert jnp.allclose(out["latent_code"], lat_ref, atol=2e-3, rtol=2e-3)
    assert jnp.allclose(out["y1_hat"], y1_ref, atol=2e-3, rtol=2e-3)
    assert jnp.allclose(out["y2_hat"], y2_ref, atol=2e-3, rtol=2e-3)

    print("KERNEL_OK")
</pallas_src>

<mosaic_0001>
module attributes {stable_mosaic.version = 11 : i64} {
  func.func @kernel(%arg0: i32, %arg1: i32, %arg2: memref<2x32x64xbf16, #tpu.memory_space<vmem>>, %arg3: memref<32x48xf32, #tpu.memory_space<vmem>>, %arg4: memref<1x48xf32, #tpu.memory_space<vmem>>, %arg5: memref<48x512xf32, #tpu.memory_space<vmem>>, %arg6: memref<1x512xf32, #tpu.memory_space<vmem>>, %arg7: memref<48x128xf32, #tpu.memory_space<vmem>>, %arg8: memref<512x128xf32, #tpu.memory_space<vmem>>, %arg9: memref<1x128xf32, #tpu.memory_space<vmem>>, %arg10: memref<2x128xf32, #tpu.memory_space<vmem>>, %arg11: memref<2x48xf32, #tpu.memory_space<vmem>>) attributes {dimension_semantics = [#tpu.dimension_semantics<parallel>, #tpu.dimension_semantics<arbitrary>], iteration_bounds = array<i64: 1, 2>, scalar_prefetch = 0 : i64, scratch_operands = 1 : i64, tpu.core_type = #tpu.core_type<tc>, window_params = [{transform_indices = @transform_0, window_bounds = array<i64: 2, 32, 64>}, {transform_indices = @transform_1, window_bounds = array<i64: 32, 48>}, {pipeline_mode = #tpu.pipeline_mode<synchronous>, transform_indices = @transform_2, window_bounds = array<i64: 1, 48>}, {pipeline_mode = #tpu.pipeline_mode<synchronous>, transform_indices = @transform_3, window_bounds = array<i64: 48, 512>}, {pipeline_mode = #tpu.pipeline_mode<synchronous>, transform_indices = @transform_4, window_bounds = array<i64: 1, 512>}, {pipeline_mode = #tpu.pipeline_mode<synchronous>, transform_indices = @transform_5, window_bounds = array<i64: 48, 128>}, {pipeline_mode = #tpu.pipeline_mode<synchronous>, transform_indices = @transform_6, window_bounds = array<i64: 512, 128>}, {pipeline_mode = #tpu.pipeline_mode<synchronous>, transform_indices = @transform_7, window_bounds = array<i64: 1, 128>}, {transform_indices = @transform_8, window_bounds = array<i64: 2, 128>}]} {
    %c0_i32 = arith.constant 0 : i32
    %0 = arith.cmpi eq, %arg1, %c0_i32 : i32
    %1 = arith.extui %0 : i1 to i32
    %c0_i32_0 = arith.constant 0 : i32
    %2 = arith.cmpi ne, %1, %c0_i32_0 : i32
    scf.if %2 {
      %cst_12 = arith.constant 0.000000e+00 : f32
      %16 = vector.broadcast %cst_12 : f32 to vector<2x48xf32>
      %c0_13 = arith.constant 0 : index
      %c0_14 = arith.constant 0 : index
      %17 = vector.load %arg11[%c0_13, %c0_14] : memref<2x48xf32, #tpu.memory_space<vmem>>, vector<2x48xf32>
      tpu.vector_store %arg11[%c0_13, %c0_14], %16 {strides = array<i32>} : memref<2x48xf32, #tpu.memory_space<vmem>>, vector<2x48xf32>,
    } else {
    }
    %c0 = arith.constant 0 : index
    %c0_1 = arith.constant 0 : index
    %c0_2 = arith.constant 0 : index
    %3 = vector.load %arg2[%c0, %c0_1, %c0_2] : memref<2x32x64xbf16, #tpu.memory_space<vmem>>, vector<2x32x64xbf16>
    %4 = arith.extf %3 : vector<2x32x64xbf16> to vector<2x32x64xf32>
    %cst = arith.constant dense<0.000000e+00> : vector<2x32xf32>
    %5 = vector.multi_reduction <add>, %4, %cst [2] : vector<2x32x64xf32> to vector<2x32xf32>
    %cst_3 = arith.constant 1.562500e-02 : f32
    %6 = vector.broadcast %cst_3 : f32 to vector<2x32xf32>
    %7 = arith.mulf %5, %6 : vector<2x32xf32>
    %c0_4 = arith.constant 0 : index
    %c0_5 = arith.constant 0 : index
    %8 = vector.load %arg11[%c0_4, %c0_5] : memref<2x48xf32, #tpu.memory_space<vmem>>, vector<2x48xf32>
    %c0_6 = arith.constant 0 : index
    %c0_7 = arith.constant 0 : index
    %9 = vector.load %arg3[%c0_6, %c0_7] : memref<32x48xf32, #tpu.memory_space<vmem>>, vector<32x48xf32>
    %cst_8 = arith.constant dense<0.000000e+00> : vector<2x48xf32>
    %10 = tpu.matmul %7, %9, %cst_8 {dimension_numbers = #tpu.dot_dimension_numbers<[1], [0], [0], [1], [0, 0, 1, 1], [], []>} : vector<2x32xf32>, vector<32x48xf32>, vector<2x48xf32> -> vector<2x48xf32>
    %11 = arith.addf %8, %10 : vector<2x48xf32>
    %c0_9 = arith.constant 0 : index
    %c0_10 = arith.constant 0 : index
    %12 = vector.load %arg11[%c0_9, %c0_10] : memref<2x48xf32, #tpu.memory_space<vmem>>, vector<2x48xf32>
    tpu.vector_store %arg11[%c0_9, %c0_10], %11 {strides = array<i32>} : memref<2x48xf32, #tpu.memory_space<vmem>>, vector<2x48xf32>,
    %c1_i32 = arith.constant 1 : i32
    %13 = arith.cmpi eq, %arg1, %c1_i32 : i32
    %14 = arith.extui %13 : i1 to i32
    %c0_i32_11 = arith.constant 0 : i32
    %15 = arith.cmpi ne, %14, %c0_i32_11 : i32
    scf.if %15 {
      %c0_12 = arith.constant 0 : index
      %c0_13 = arith.constant 0 : index
      %16 = vector.load %arg11[%c0_12, %c0_13] : memref<2x48xf32, #tpu.memory_space<vmem>>, vector<2x48xf32>
      %c0_14 = arith.constant 0 : index
      %c0_15 = arith.constant 0 : index
      %17 = vector.load %arg4[%c0_14, %c0_15] : memref<1x48xf32, #tpu.memory_space<vmem>>, vector<1x48xf32>
      %18 = vector.broadcast %17 : vector<1x48xf32> to vector<2x48xf32>
      %19 = arith.addf %16, %18 : vector<2x48xf32>
      %c0_16 = arith.constant 0 : index
      %c0_17 = arith.constant 0 : index
      %20 = vector.load %arg5[%c0_16, %c0_17] : memref<48x512xf32, #tpu.memory_space<vmem>>, vector<48x512xf32>
      %cst_18 = arith.constant dense<0.000000e+00> : vector<2x512xf32>
      %21 = tpu.matmul %19, %20, %cst_18 {dimension_numbers = #tpu.dot_dimension_numbers<[1], [0], [0], [1], [0, 0, 1, 1], [], []>} : vector<2x48xf32>, vector<48x512xf32>, vector<2x512xf32> -> vector<2x512xf32>
      %c0_19 = arith.constant 0 : index
      %c0_20 = arith.constant 0 : index
      %22 = vector.load %arg6[%c0_19, %c0_20] : memref<1x512xf32, #tpu.memory_space<vmem>>, vector<1x512xf32>
      %23 = vector.broadcast %22 : vector<1x512xf32> to vector<2x512xf32>
      %24 = arith.addf %21, %23 : vector<2x512xf32>
      %cst_21 = arith.constant 0.000000e+00 : f32
      %25 = vector.broadcast %cst_21 : f32 to vector<2x512xf32>
      %26 = arith.maximumf %24, %25 : vector<2x512xf32>
      %c0_22 = arith.constant 0 : index
      %c0_23 = arith.constant 0 : index
      %27 = vector.load %arg7[%c0_22, %c0_23] : memref<48x128xf32, #tpu.memory_space<vmem>>, vector<48x128xf32>
      %cst_24 = arith.constant dense<0.000000e+00> : vector<2x128xf32>
      %28 = tpu.matmul %19, %27, %cst_24 {dimension_numbers = #tpu.dot_dimension_numbers<[1], [0], [0], [1], [0, 0, 1, 1], [], []>} : vector<2x48xf32>, vector<48x128xf32>, vector<2x128xf32> -> vector<2x128xf32>
      %c0_25 = arith.constant 0 : index
      %c0_26 = arith.constant 0 : index
      %29 = vector.load %arg8[%c0_25, %c0_26] : memref<512x128xf32, #tpu.memory_space<vmem>>, vector<512x128xf32>
      %cst_27 = arith.constant dense<0.000000e+00> : vector<2x128xf32>
      %30 = tpu.matmul %26, %29, %cst_27 {dimension_numbers = #tpu.dot_dimension_numbers<[1], [0], [0], [1], [0, 0, 1, 1], [], []>} : vector<2x512xf32>, vector<512x128xf32>, vector<2x128xf32> -> vector<2x128xf32>
      %31 = arith.addf %28, %30 : vector<2x128xf32>
      %c0_28 = arith.constant 0 : index
      %c0_29 = arith.constant 0 : index
      %32 = vector.load %arg9[%c0_28, %c0_29] : memref<1x128xf32, #tpu.memory_space<vmem>>, vector<1x128xf32>
      %33 = vector.broadcast %32 : vector<1x128xf32> to vector<2x128xf32>
      %34 = arith.addf %31, %33 : vector<2x128xf32>
      %c0_30 = arith.constant 0 : index
      %c0_31 = arith.constant 0 : index
      %35 = vector.load %arg10[%c0_30, %c0_31] : memref<2x128xf32, #tpu.memory_space<vmem>>, vector<2x128xf32>
      tpu.vector_store %arg10[%c0_30, %c0_31], %34 {strides = array<i32>} : memref<2x128xf32, #tpu.memory_space<vmem>>, vector<2x128xf32>,
    } else {
    }
    return
  }
  func.func @transform_0(%arg0: i32, %arg1: i32) -> (i32, i32, i32) {
    %c0_i32 = arith.constant 0 : i32
    %c0_i32_0 = arith.constant 0 : i32
    return %arg0, %arg1, %c0_i32 : i32, i32, i32
  }
  func.func @transform_1(%arg0: i32, %arg1: i32) -> (i32, i32) {
    %c0_i32 = arith.constant 0 : i32
    %c0_i32_0 = arith.constant 0 : i32
    return %arg1, %c0_i32 : i32, i32
  }
  func.func @transform_2(%arg0: i32, %arg1: i32) -> (i32, i32) {
    %c0_i32 = arith.constant 0 : i32
    %c0_i32_0 = arith.constant 0 : i32
    %c0_i32_1 = arith.constant 0 : i32
    return %c0_i32, %c0_i32_0 : i32, i32
  }
  func.func @transform_3(%arg0: i32, %arg1: i32) -> (i32, i32) {
    %c0_i32 = arith.constant 0 : i32
    %c0_i32_0 = arith.constant 0 : i32
    %c0_i32_1 = arith.constant 0 : i32
    return %c0_i32, %c0_i32_0 : i32, i32
  }
  func.func @transform_4(%arg0: i32, %arg1: i32) -> (i32, i32) {
    %c0_i32 = arith.constant 0 : i32
    %c0_i32_0 = arith.constant 0 : i32
    %c0_i32_1 = arith.constant 0 : i32
    return %c0_i32, %c0_i32_0 : i32, i32
  }
  func.func @transform_5(%arg0: i32, %arg1: i32) -> (i32, i32) {
    %c0_i32 = arith.constant 0 : i32
    %c0_i32_0 = arith.constant 0 : i32
    %c0_i32_1 = arith.constant 0 : i32
    return %c0_i32, %c0_i32_0 : i32, i32
  }
  func.func @transform_6(%arg0: i32, %arg1: i32) -> (i32, i32) {
    %c0_i32 = arith.constant 0 : i32
    %c0_i32_0 = arith.constant 0 : i32
    %c0_i32_1 = arith.constant 0 : i32
    return %c0_i32, %c0_i32_0 : i32, i32
  }
  func.func @transform_7(%arg0: i32, %arg1: i32) -> (i32, i32) {
    %c0_i32 = arith.constant 0 : i32
    %c0_i32_0 = arith.constant 0 : i32
    %c0_i32_1 = arith.constant 0 : i32
    return %c0_i32, %c0_i32_0 : i32, i32
  }
  func.func @transform_8(%arg0: i32, %arg1: i32) -> (i32, i32) {
    %c0_i32 = arith.constant 0 : i32
    %c0_i32_0 = arith.constant 0 : i32
    return %arg0, %c0_i32 : i32, i32
  }
}

</mosaic_0001>

<llo_original>
// kernel: tpu_custom_call.1
$region0: #{tpu_custom_call.1}
  #allocation0 [shape = 'u32[]', space=smem, size = 0x4, offset = 0x4, fixed_abs, tag = 'smem constant byte address 0x4 - core index']
  #allocation1 [shape = 'u32[144,128]{1,0:T(1,128)}', space=vmem, size = 0x12000, scoped, tag = 'internal scratch']
  #allocation2 [shape = 'f32[2,48]{1,0:T(2,128)}', space=vmem, size = 0x400, scoped, tag = 'scratch operand']
  %s0 = inlined_call_operand.vmem [shape: bf16[2,64,64], index: 0, kind: input, shape index: {}]
  %s1 = inlined_call_operand.vmem [shape: f32[64,48], index: 1, kind: input, shape index: {}]
  %s2 = inlined_call_operand.vmem [shape: f32[1,48], index: 2, kind: input, shape index: {}]
  %s3 = inlined_call_operand.hbm [shape: f32[48,512], index: 3, kind: input, shape index: {}]
  %s4 = inlined_call_operand.vmem [shape: f32[1,512], index: 4, kind: input, shape index: {}]
  %s5 = inlined_call_operand.vmem [shape: f32[48,128], index: 5, kind: input, shape index: {}]
  %s6 = inlined_call_operand.hbm [shape: f32[512,128], index: 6, kind: input, shape index: {}]
  %s7 = inlined_call_operand.vmem [shape: f32[1,128], index: 7, kind: input, shape index: {}]
  %s8 = inlined_call_operand.hbm [shape: f32[2,128], index: 8, kind: output, shape index: {}]
  %s9 = sld [smem:[#allocation0]]
  $region122: #{tpu_custom_call.1} parent=0
    _
  %s11 = ssub.s32 1, %s9
  %s12 = scalar_select 0, %s11, %s9
  $region1: #{tpu_custom_call.1} parent=0
    #allocation3 [shape = 'u8[32768]{0}', space=vmem, size = 0x8000, scoped, tag = 'input window, operand 0']
    #allocation4 [shape = 'u8[98304]{0}', space=vmem, size = 0x18000, scoped, tag = 'input window, operand 3, single buffered']
    #allocation5 [shape = 's32[2]{0}', space=sflag, size = 0x8, scoped, tag = 'scoped memory for tpu_custom_call.1']
    #allocation6 [shape = 's32[2]{0}', space=sflag, size = 0x8, scoped, tag = 'scoped memory for tpu_custom_call.1']
    #allocation7 [shape = 'u8[262144]{0}', space=vmem, size = 0x40000, scoped, tag = 'input window, operand 6, single buffered']
    #allocation8 [shape = 's32[1]{0}', space=sflag, size = 0x4, scoped, tag = 'scoped memory for tpu_custom_call.1']
    #allocation9 [shape = 'u8[1024]{0}', space=vmem, size = 0x400, scoped, tag = 'output window, operand 0, single buffered']
    %13 = vsyncpa [#allocation5], 0
    %14 = vsyncpa [#allocation8], 0
    %15 = vsyncpa [#allocation6], 0
    loop: start=0, step=1, limit=4
    $region2: #{tpu_custom_call.1} parent=1 // loop_pre_header
      _
    $region3: #{tpu_custom_call.1} parent=1 // loop_header
      %s17 = sphi 0, %s21
      %p18 = scmp.ge.s32.totalorder %s17, 4
      %s24 = sphi 0, %s36
      %s25 = sphi 0, %s32
      %s26 = sphi 0, %s24
      %s27 = sphi 0, %s25
      %s28 = sphi 0, %s26
      %s29 = sphi 0, %s27
      %s41 = sphi 0, %s43
      %s44 = sphi 0, %s41
      %s45 = sphi 0, %s44
      %s61 = sphi 0, %s45
      %s67 = sphi 0, %s69
      %s70 = sphi 0, %s67
      %s71 = sphi 0, %s70
      %s87 = sphi 0, %s71
      %s91 = sphi 0, %s91
      %s93 = sphi 0, %s91
      %s94 = sphi 0, %s93
      %s108 = sphi 0, %s94
      %s112 = sphi 0, %s112
      %s114 = sphi 0, %s112
      %s115 = sphi 0, %s114
      %s129 = sphi 0, %s115
      %s133 = sphi 0, %s133
      %s135 = sphi 0, %s133
      %s136 = sphi 0, %s135
      %s150 = sphi 0, %s136
      %s154 = sphi 0, %s154
      %s156 = sphi 0, %s154
      %s157 = sphi 0, %s156
      %s171 = sphi 0, %s157
      %s175 = sphi 0, %s175
      %s177 = sphi 0, %s175
      %s178 = sphi 0, %s177
      %s192 = sphi 0, %s178
      %s196 = sphi 0, %s196
      %s198 = sphi 0, %s196
      %s199 = sphi 0, %s198
      %s213 = sphi 0, %s199
      %s219 = sphi 0, %s221
      %s222 = sphi 0, %s219
      %s223 = sphi 0, %s222
      %s239 = sphi 0, %s223
    $region4: #{tpu_custom_call.1} parent=1 // loop_header_branch
      %20 = sbr.rel (%p18) target = $region8
    $region5: #{tpu_custom_call.1} parent=1 // loop_body
      %s22 = ssub.s32 %s17, 1
      %s23 = ssub.s32 %s17, 2
      %s30 = sadd.s32 1, %s25
      %p31 = scmp.ge.s32.totalorder %s30, 2
      %s32 = scalar_select %p31, 0, %s30
      %s33 = sadd.s32 1, %s24
      %s34 = scalar_select %p31, %s33, %s24
      %p35 = scmp.ge.s32.totalorder %s34, 1
      %s36 = scalar_select %p35, 0, %s34
      %s37 = ssub.s32 %s24, %s36
      %s38 = ssub.s32 %s25, %s32
      %s39 = sor.u32 %s37, %s38
      %p40 = scmp.eq.s32.totalorder %s39, 0
      %s42 = sadd.s32 %s41, 1
      %s43 = scalar_select %p40, %s41, %s42
      %p46 = pneg %p40
      %p47 = scmp.eq.s32.totalorder %s17, 1
      %p48 = por %p46, %p47
      %p49 = scmp.ne.s32.totalorder %s41, %s44
      %p50 = scmp.eq.s32.totalorder %s17, 0
      %p51 = por %p49, %p50
      %p52 = scmp.ne.s32.totalorder %s41, %s44
      %p53 = scmp.eq.s32.totalorder %s22, 1
      %p54 = por %p52, %p53
      %p55 = scmp.ne.s32.totalorder %s44, %s45
      %p56 = scmp.eq.s32.totalorder %s22, 0
      %p57 = por %p55, %p56
      %p58 = scmp.ne.s32.totalorder %s44, %s45
      %p59 = scmp.eq.s32.totalorder %s23, 1
      %p60 = por %p58, %p59
      %p62 = scmp.ne.s32.totalorder %s45, %s61
      %p63 = scmp.eq.s32.totalorder %s23, 0
      %p64 = por %p62, %p63
      %s65 = ssub.s32 %s25, %s32
      %p66 = scmp.eq.s32.totalorder %s65, 0
      %s68 = sadd.s32 %s67, 1
      %s69 = scalar_select %p66, %s67, %s68
      %p72 = pneg %p66
      %p73 = scmp.eq.s32.totalorder %s17, 1
      %p74 = por %p72, %p73
      %p75 = scmp.ne.s32.totalorder %s67, %s70
      %p76 = scmp.eq.s32.totalorder %s17, 0
      %p77 = por %p75, %p76
      %p78 = scmp.ne.s32.totalorder %s67, %s70
      %p79 = scmp.eq.s32.totalorder %s22, 1
      %p80 = por %p78, %p79
      %p81 = scmp.ne.s32.totalorder %s70, %s71
      %p82 = scmp.eq.s32.totalorder %s22, 0
      %p83 = por %p81, %p82
      %p84 = scmp.ne.s32.totalorder %s70, %s71
      %p85 = scmp.eq.s32.totalorder %s23, 1
      %p86 = por %p84, %p85
      %p88 = scmp.ne.s32.totalorder %s71, %s87
      %p89 = scmp.eq.s32.totalorder %s23, 0
      %p90 = por %p88, %p89
      %s92 = sadd.s32 %s91, 1
      %p95 = scmp.eq.s32.totalorder %s17, 1
      %p96 = scmp.ne.s32.totalorder %s91, %s93
      %p97 = scmp.eq.s32.totalorder %s17, 0
      %p98 = por %p96, %p97
      %p99 = scmp.ne.s32.totalorder %s91, %s93
      %p100 = scmp.eq.s32.totalorder %s22, 1
      %p101 = por %p99, %p100
      %p102 = scmp.ne.s32.totalorder %s93, %s94
      %p103 = scmp.eq.s32.totalorder %s22, 0
      %p104 = por %p102, %p103
      %p105 = scmp.ne.s32.totalorder %s93, %s94
      %p106 = scmp.eq.s32.totalorder %s23, 1
      %p107 = por %p105, %p106
      %p109 = scmp.ne.s32.totalorder %s94, %s108
      %p110 = scmp.eq.s32.totalorder %s23, 0
      %p111 = por %p109, %p110
      %s113 = sadd.s32 %s112, 1
      %p116 = scmp.eq.s32.totalorder %s17, 1
      %p117 = scmp.ne.s32.totalorder %s112, %s114
      %p118 = scmp.eq.s32.totalorder %s17, 0
      %p119 = por %p117, %p118
      %p120 = scmp.ne.s32.totalorder %s112, %s114
      %p121 = scmp.eq.s32.totalorder %s22, 1
      %p122 = por %p120, %p121
      %p123 = scmp.ne.s32.totalorder %s114, %s115
      %p124 = scmp.eq.s32.totalorder %s22, 0
      %p125 = por %p123, %p124
      %p126 = scmp.ne.s32.totalorder %s114, %s115
      %p127 = scmp.eq.s32.totalorder %s23, 1
      %p128 = por %p126, %p127
      %p130 = scmp.ne.s32.totalorder %s115, %s129
      %p131 = scmp.eq.s32.totalorder %s23, 0
      %p132 = por %p130, %p131
      %s134 = sadd.s32 %s133, 1
      %p137 = scmp.eq.s32.totalorder %s17, 1
      %p138 = scmp.ne.s32.totalorder %s133, %s135
      %p139 = scmp.eq.s32.totalorder %s17, 0
      %p140 = por %p138, %p139
      %p141 = scmp.ne.s32.totalorder %s133, %s135
      %p142 = scmp.eq.s32.totalorder %s22, 1
      %p143 = por %p141, %p142
      %p144 = scmp.ne.s32.totalorder %s135, %s136
      %p145 = scmp.eq.s32.totalorder %s22, 0
      %p146 = por %p144, %p145
      %p147 = scmp.ne.s32.totalorder %s135, %s136
      %p148 = scmp.eq.s32.totalorder %s23, 1
      %p149 = por %p147, %p148
      %p151 = scmp.ne.s32.totalorder %s136, %s150
      %p152 = scmp.eq.s32.totalorder %s23, 0
      %p153 = por %p151, %p152
      %s155 = sadd.s32 %s154, 1
      %p158 = scmp.eq.s32.totalorder %s17, 1
      %p159 = scmp.ne.s32.totalorder %s154, %s156
      %p160 = scmp.eq.s32.totalorder %s17, 0
      %p161 = por %p159, %p160
      %p162 = scmp.ne.s32.totalorder %s154, %s156
      %p163 = scmp.eq.s32.totalorder %s22, 1
      %p164 = por %p162, %p163
      %p165 = scmp.ne.s32.totalorder %s156, %s157
      %p166 = scmp.eq.s32.totalorder %s22, 0
      %p167 = por %p165, %p166
      %p168 = scmp.ne.s32.totalorder %s156, %s157
      %p169 = scmp.eq.s32.totalorder %s23, 1
      %p170 = por %p168, %p169
      %p172 = scmp.ne.s32.totalorder %s157, %s171
      %p173 = scmp.eq.s32.totalorder %s23, 0
      %p174 = por %p172, %p173
      %s176 = sadd.s32 %s175, 1
      %p179 = scmp.eq.s32.totalorder %s17, 1
      %p180 = scmp.ne.s32.totalorder %s175, %s177
      %p181 = scmp.eq.s32.totalorder %s17, 0
      %p182 = por %p180, %p181
      %p183 = scmp.ne.s32.totalorder %s175, %s177
      %p184 = scmp.eq.s32.totalorder %s22, 1
      %p185 = por %p183, %p184
      %p186 = scmp.ne.s32.totalorder %s177, %s178
      %p187 = scmp.eq.s32.totalorder %s22, 0
      %p188 = por %p186, %p187
      %p189 = scmp.ne.s32.totalorder %s177, %s178
      %p190 = scmp.eq.s32.totalorder %s23, 1
      %p191 = por %p189, %p190
      %p193 = scmp.ne.s32.totalorder %s178, %s192
      %p194 = scmp.eq.s32.totalorder %s23, 0
      %p195 = por %p193, %p194
      %s197 = sadd.s32 %s196, 1
      %p200 = scmp.eq.s32.totalorder %s17, 1
      %p201 = scmp.ne.s32.totalorder %s196, %s198
      %p202 = scmp.eq.s32.totalorder %s17, 0
      %p203 = por %p201, %p202
      %p204 = scmp.ne.s32.totalorder %s196, %s198
      %p205 = scmp.eq.s32.totalorder %s22, 1
      %p206 = por %p204, %p205
      %p207 = scmp.ne.s32.totalorder %s198, %s199
      %p208 = scmp.eq.s32.totalorder %s22, 0
      %p209 = por %p207, %p208
      %p210 = scmp.ne.s32.totalorder %s198, %s199
      %p211 = scmp.eq.s32.totalorder %s23, 1
      %p212 = por %p210, %p211
      %p214 = scmp.ne.s32.totalorder %s199, %s213
      %p215 = scmp.eq.s32.totalorder %s23, 0
      %p216 = por %p214, %p215
      %s217 = ssub.s32 %s24, %s36
      %p218 = scmp.eq.s32.totalorder %s217, 0
      %s220 = sadd.s32 %s219, 1
      %s221 = scalar_select %p218, %s219, %s220
      %p224 = pneg %p218
      %p225 = scmp.eq.s32.totalorder %s17, 1
      %p226 = por %p224, %p225
      %p227 = scmp.ne.s32.totalorder %s219, %s222
      %p228 = scmp.eq.s32.totalorder %s17, 0
      %p229 = por %p227, %p228
      %p230 = scmp.ne.s32.totalorder %s219, %s222
      %p231 = scmp.eq.s32.totalorder %s22, 1
      %p232 = por %p230, %p231
      %p233 = scmp.ne.s32.totalorder %s222, %s223
      %p234 = scmp.eq.s32.totalorder %s22, 0
      %p235 = por %p233, %p234
      %p236 = scmp.ne.s32.totalorder %s222, %s223
      %p237 = scmp.eq.s32.totalorder %s23, 1
      %p238 = por %p236, %p237
      %p240 = scmp.ne.s32.totalorder %s223, %s239
      %p241 = scmp.eq.s32.totalorder %s23, 0
      %p242 = por %p240, %p241
      %p243 = scmp.le.s32.totalorder 1, %s17
      %p244 = scmp.lt.s32.totalorder %s17, 3
      %p245 = pnand %p243, %p244
      %p246 = pneg %p245
      // Predicated region
      $region9: #{tpu_custom_call.1} parent=5 // pred_check
        _
      $region10: #{tpu_custom_call.1} parent=5 // pred_check_branch
        %248 = sbr.rel (%p245) target = $region12
      $region11: #{tpu_custom_call.1} parent=5 // pred_region
        %s249 = ssub.s32 %s17, 1
        // Predicated region
        $region13: #{tpu_custom_call.1} parent=11 // pred_check
          %p250 = pneg %p104
        $region14: #{tpu_custom_call.1} parent=11 // pred_check_branch
          %252 = sbr.rel (%p250) target = $region16
        $region15: #{tpu_custom_call.1} parent=11 // pred_region
          _
        $region16: #{tpu_custom_call.1} parent=11 // pred_fallthru
          _
        // Predicated region
        $region17: #{tpu_custom_call.1} parent=11 // pred_check
          %p253 = pneg %p125
        $region18: #{tpu_custom_call.1} parent=11 // pred_check_branch
          %255 = sbr.rel (%p253) target = $region20
        $region19: #{tpu_custom_call.1} parent=11 // pred_region
          %s257 = ssub.s32 3072, 3072
          %258 = vsyncadd [#allocation5], %s257
          %s259 = sshll.u32 [#allocation4], 4
          %s260 = int_to_ptr.vmem [resolvable:$true] %s259
          %265 = dma.hbm_to_vmem [thread:$0]  %s3, 3072, %s260, [#allocation5], 512, 512, 32
        $region20: #{tpu_custom_call.1} parent=11 // pred_fallthru
          _
        // Predicated region
        $region21: #{tpu_custom_call.1} parent=11 // pred_check
          %p266 = pneg %p146
        $region22: #{tpu_custom_call.1} parent=11 // pred_check_branch
          %268 = sbr.rel (%p266) target = $region24
        $region23: #{tpu_custom_call.1} parent=11 // pred_region
          _
        $region24: #{tpu_custom_call.1} parent=11 // pred_fallthru
          _
        // Predicated region
        $region25: #{tpu_custom_call.1} parent=11 // pred_check
          %p269 = pneg %p167
        $region26: #{tpu_custom_call.1} parent=11 // pred_check_branch
          %271 = sbr.rel (%p269) target = $region28
        $region27: #{tpu_custom_call.1} parent=11 // pred_region
          _
        $region28: #{tpu_custom_call.1} parent=11 // pred_fallthru
          _
        // Predicated region
        $region29: #{tpu_custom_call.1} parent=11 // pred_check
          %p272 = pneg %p188
        $region30: #{tpu_custom_call.1} parent=11 // pred_check_branch
          %274 = sbr.rel (%p272) target = $region32
        $region31: #{tpu_custom_call.1} parent=11 // pred_region
          %s276 = ssub.s32 8192, 8192
          %277 = vsyncadd [#allocation8], %s276
          %s278 = sshll.u32 [#allocation7], 4
          %s279 = int_to_ptr.vmem [resolvable:$true] %s278
          %284 = dma.hbm_to_vmem [thread:$0]  %s6, 8192, %s279, [#allocation8], 128, 128, 8
        $region32: #{tpu_custom_call.1} parent=11 // pred_fallthru
          _
        // Predicated region
        $region33: #{tpu_custom_call.1} parent=11 // pred_check
          %p285 = pneg %p209
        $region34: #{tpu_custom_call.1} parent=11 // pred_check_branch
          %287 = sbr.rel (%p285) target = $region36
        $region35: #{tpu_custom_call.1} parent=11 // pred_region
          _
        $region36: #{tpu_custom_call.1} parent=11 // pred_fallthru
          _
      $region12: #{tpu_custom_call.1} parent=5 // pred_fallthru
        _
      %p288 = scmp.lt.s32.totalorder %s17, 2
      // Predicated region
      $region37: #{tpu_custom_call.1} parent=5 // pred_check
        %p289 = pneg %p288
      $region38: #{tpu_custom_call.1} parent=5 // pred_check_branch
        %291 = sbr.rel (%p289) target = $region40
      $region39: #{tpu_custom_call.1} parent=5 // pred_region
        // Predicated region
        $region41: #{tpu_custom_call.1} parent=39 // pred_check
          %p292 = pneg %p51
        $region42: #{tpu_custom_call.1} parent=39 // pred_check_branch
          %294 = sbr.rel (%p292) target = $region44
        $region43: #{tpu_custom_call.1} parent=39 // pred_region
          %s295 = sand.u32 %s41, 1
          %s296 = sand.u32 %s41, 1
          %s297 = smul.addr %s296, 32
          %s298 = scalar_lea.vmem [#allocation3], %s297
          %s299 = smul.u32 2, %s24
          %s300 = smul.u32 4, %s25
          %s301 = smul.addr %s299, 8
          %s302 = sadd.s32 %s300, %s301
          %s303 = smul.addr %s302, 4
          %s304 = scalar_lea.vmem %s0, %s303
          // Predicated region
          $region45: #{tpu_custom_call.1} parent=43 // pred_check
            _
          $region46: #{tpu_custom_call.1} parent=43 // pred_check_branch
            %306 = sbr.rel (0) target = $region48
          $region47: #{tpu_custom_call.1} parent=43 // pred_region
            // Predicated region
            $region49: #{tpu_custom_call.1} parent=47 // pred_check
              _
            $region50: #{tpu_custom_call.1} parent=47 // pred_check_branch
              %308 = sbr.rel target = $region52
            $region51: #{tpu_custom_call.1} parent=47 // pred_region
              // Predicated region
              $region64: #{tpu_custom_call.1} parent=51 // pred_check
                _
              $region65: #{tpu_custom_call.1} parent=51 // pred_check_branch
                %338 = sbr.rel (0) target = $region67
              $region66: #{tpu_custom_call.1} parent=51 // pred_region
                loop: start=0, step=1, limit=1
                $region68: #{tpu_custom_call.1} parent=66 // loop_pre_header
                  _
                $region69: #{tpu_custom_call.1} parent=66 // loop_header
                  %s340 = sphi 0, %s344
                  %p341 = scmp.ge.s32.totalorder %s340, 1
                  %s345 = sphi %s304, %s304
                  %s346 = sphi %s298, %s298
                $region70: #{tpu_custom_call.1} parent=66 // loop_header_branch
                  %343 = sbr.rel (%p341) target = $region74
                $region71: #{tpu_custom_call.1} parent=66 // loop_body
                  _
                $region72: #{tpu_custom_call.1} parent=66 // loop_footer
                  %s344 = sadd.s32 1, %s340
                $region73: #{tpu_custom_call.1} parent=66 // loop_footer_branch
                  %339 = sbr.rel target = $region69
                $region74: #{tpu_custom_call.1} parent=66 // loop_exit
                  _
                %s348 = ssub.s32 16, 1
                loop: start=0, step=1, limit=1
                $region75: #{tpu_custom_call.1} parent=66 // loop_pre_header
                  _
                $region76: #{tpu_custom_call.1} parent=66 // loop_header
                  %s350 = sphi 0, %s354
                  %p351 = scmp.ge.s32.totalorder %s350, 1
                  %s355 = sphi %s304, %s304
                  %s356 = sphi %s298, %s298
                $region77: #{tpu_custom_call.1} parent=66 // loop_header_branch
                  %353 = sbr.rel (%p351) target = $region81
                $region78: #{tpu_custom_call.1} parent=66 // loop_body
                  %v357 = vld [vmem:[%s355] sm:%s348]
                  %358 = vst [vmem:[%s356] sm:%s348] %v357
                  %v359 = vld [vmem:[%s355 + $0x4] sm:%s348]
                  %360 = vst [vmem:[%s356 + $0x4] sm:%s348] %v359
                  %v361 = vld [vmem:[%s355 + $0x8] sm:%s348]
                  %362 = vst [vmem:[%s356 + $0x8] sm:%s348] %v361
                  %v363 = vld [vmem:[%s355 + $0xc] sm:%s348]
                  %364 = vst [vmem:[%s356 + $0xc] sm:%s348] %v363
                  %v365 = vld [vmem:[%s355 + $0x20] sm:%s348]
                  %366 = vst [vmem:[%s356 + $0x10] sm:%s348] %v365
                  %v367 = vld [vmem:[%s355 + $0x24] sm:%s348]
                  %368 = vst [vmem:[%s356 + $0x14] sm:%s348] %v367
                  %v369 = vld [vmem:[%s355 + $0x28] sm:%s348]
                  %370 = vst [vmem:[%s356 + $0x18] sm:%s348] %v369
                  %v371 = vld [vmem:[%s355 + $0x2c] sm:%s348]
                  %372 = vst [vmem:[%s356 + $0x1c] sm:%s348] %v371
                $region79: #{tpu_custom_call.1} parent=66 // loop_footer
                  %s354 = sadd.s32 1, %s350
                $region80: #{tpu_custom_call.1} parent=66 // loop_footer_branch
                  %349 = sbr.rel target = $region76
                $region81: #{tpu_custom_call.1} parent=66 // loop_exit
                  _
              $region67: #{tpu_custom_call.1} parent=51 // pred_fallthru
                _
            $region52: #{tpu_custom_call.1} parent=47 // pred_fallthru
              _
            // Predicated region
            $region53: #{tpu_custom_call.1} parent=47 // pred_check
              _
            $region54: #{tpu_custom_call.1} parent=47 // pred_check_branch
              %310 = sbr.rel (0) target = $region56
            $region55: #{tpu_custom_call.1} parent=47 // pred_region
              %s312 = ssub.s32 16, 1
              loop: start=0, step=1, limit=1
              $region57: #{tpu_custom_call.1} parent=55 // loop_pre_header
                _
              $region58: #{tpu_custom_call.1} parent=55 // loop_header
                %s314 = sphi 0, %s318
                %p315 = scmp.ge.s32.totalorder %s314, 1
                %s319 = sphi %s304, %s304
                %s320 = sphi %s298, %s298
              $region59: #{tpu_custom_call.1} parent=55 // loop_header_branch
                %317 = sbr.rel (%p315) target = $region63
              $region60: #{tpu_custom_call.1} parent=55 // loop_body
                %v321 = vld [vmem:[%s319] sm:%s312]
                %322 = vst [vmem:[%s320] sm:%s312] %v321
                %v323 = vld [vmem:[%s319 + $0x4] sm:%s312]
                %324 = vst [vmem:[%s320 + $0x4] sm:%s312] %v323
                %v325 = vld [vmem:[%s319 + $0x8] sm:%s312]
                %326 = vst [vmem:[%s320 + $0x8] sm:%s312] %v325
                %v327 = vld [vmem:[%s319 + $0xc] sm:%s312]
                %328 = vst [vmem:[%s320 + $0xc] sm:%s312] %v327
                %v329 = vld [vmem:[%s319 + $0x20] sm:%s312]
                %330 = vst [vmem:[%s320 + $0x10] sm:%s312] %v329
                %v331 = vld [vmem:[%s319 + $0x24] sm:%s312]
                %332 = vst [vmem:[%s320 + $0x14] sm:%s312] %v331
                %v333 = vld [vmem:[%s319 + $0x28] sm:%s312]
                %334 = vst [vmem:[%s320 + $0x18] sm:%s312] %v333
                %v335 = vld [vmem:[%s319 + $0x2c] sm:%s312]
                %336 = vst [vmem:[%s320 + $0x1c] sm:%s312] %v335
              $region61: #{tpu_custom_call.1} parent=55 // loop_footer
                %s318 = sadd.s32 1, %s314
              $region62: #{tpu_custom_call.1} parent=55 // loop_footer_branch
                %313 = sbr.rel target = $region58
              $region63: #{tpu_custom_call.1} parent=55 // loop_exit
                _
            $region56: #{tpu_custom_call.1} parent=47 // pred_fallthru
              _
          $region48: #{tpu_custom_call.1} parent=43 // pred_fallthru
            _
          %373 = vnop
        $region44: #{tpu_custom_call.1} parent=39 // pred_fallthru
          _
        // Predicated region
        $region82: #{tpu_custom_call.1} parent=39 // pred_check
          %p374 = pneg %p77
        $region83: #{tpu_custom_call.1} parent=39 // pred_check_branch
          %376 = sbr.rel (%p374) target = $region85
        $region84: #{tpu_custom_call.1} parent=39 // pred_region
          %s377 = smul.u32 4, %s25
          %p378 = scmp.lt.s32.totalorder %s377, 7
          %s379 = scalar_select %p378, %s377, 7
          %s380 = smul.addr %s379, 8
          %s381 = scalar_lea.vmem %s1, %s380
          %s382 = smul.u32 4, %s25
        $region85: #{tpu_custom_call.1} parent=39 // pred_fallthru
          _
      $region40: #{tpu_custom_call.1} parent=5 // pred_fallthru
        _
      %p383 = scmp.le.s32.totalorder 1, %s17
      %p384 = scmp.lt.s32.totalorder %s17, 3
      %p385 = pnand %p383, %p384
      %p386 = pneg %p385
      // Predicated region
      $region86: #{tpu_custom_call.1} parent=5 // pred_check
        _
      $region87: #{tpu_custom_call.1} parent=5 // pred_check_branch
        %388 = sbr.rel (%p385) target = $region89
      $region88: #{tpu_custom_call.1} parent=5 // pred_region
        %s389 = ssub.s32 %s17, 1
        %s390 = sand.u32 %s44, 1
        %s391 = sand.u32 %s44, 1
        %s392 = smul.addr %s391, 32
        %s393 = scalar_lea.vmem [#allocation3], %s392
        // Predicated region
        $region90: #{tpu_custom_call.1} parent=88 // pred_check
          %p394 = pneg %p57
        $region91: #{tpu_custom_call.1} parent=88 // pred_check_branch
          %396 = sbr.rel (%p394) target = $region93
        $region92: #{tpu_custom_call.1} parent=88 // pred_region
          _
        $region93: #{tpu_custom_call.1} parent=88 // pred_fallthru
          _
        // Predicated region
        $region94: #{tpu_custom_call.1} parent=88 // pred_check
          %p397 = pneg %p125
        $region95: #{tpu_custom_call.1} parent=88 // pred_check_branch
          %399 = sbr.rel (%p397) target = $region97
        $region96: #{tpu_custom_call.1} parent=88 // pred_region
          %400 = dma.done [#allocation5], 3072
        $region97: #{tpu_custom_call.1} parent=88 // pred_fallthru
          _
        // Predicated region
        $region98: #{tpu_custom_call.1} parent=88 // pred_check
          %p401 = pneg %p188
        $region99: #{tpu_custom_call.1} parent=88 // pred_check_branch
          %403 = sbr.rel (%p401) target = $region101
        $region100: #{tpu_custom_call.1} parent=88 // pred_region
          %404 = dma.done [#allocation8], 8192
        $region101: #{tpu_custom_call.1} parent=88 // pred_fallthru
          _
        %s405 = sand.u32 %s44, 1
        %s406 = sand.u32 %s44, 1
        %s407 = smul.addr %s406, 32
        %s408 = scalar_lea.vmem [#allocation3], %s407
        %p409 = pneg %p57
        %p410 = pneg %p54
        %s411 = smul.u32 4, %s27
        %p412 = scmp.lt.s32.totalorder %s411, 7
        %s413 = scalar_select %p412, %s411, 7
        %s414 = smul.addr %s413, 8
        %s415 = scalar_lea.vmem %s1, %s414
        %p416 = pneg %p83
        %p417 = pneg %p80
        %p418 = pneg %p104
        %p419 = pneg %p101
        %p420 = pneg %p125
        %p421 = pneg %p122
        %p422 = pneg %p146
        %p423 = pneg %p143
        %p424 = pneg %p167
        %p425 = pneg %p164
        %p426 = pneg %p188
        %p427 = pneg %p185
        %p428 = pneg %p209
        %p429 = pneg %p206
        %p430 = pneg %p235
        %p431 = pneg %p232
        %s432 = smul.u32 2, %s26
        %s433 = smul.u32 4, %s27
        %s434 = smul.u32 4, %s27
        %p435 = scmp.lt.s32.totalorder %s434, 7
        %s436 = scalar_select %p435, %s434, 7
        %s437 = smul.addr %s436, 8
        %s438 = scalar_lea.vmem %s1, %s437
        %s439 = smul.u32 4, %s27
        %p440 = scmp.eq.s32.totalorder %s27, 0
        // Predicated region
        $region102: #{tpu_custom_call.1} parent=88 // pred_check
          %p441 = pneg %p440
        $region103: #{tpu_custom_call.1} parent=88 // pred_check_branch
          %443 = sbr.rel (%p441) target = $region105
        $region104: #{tpu_custom_call.1} parent=88 // pred_region
          %vm444 = vcmask 386048
          %445 = vst.msk [vmem:[#allocation2] sm:$0x3] %vm444, 0.0
        $region105: #{tpu_custom_call.1} parent=88 // pred_fallthru
          _
        %v446 = vld [vmem:[%s393] sm:$0xf]
        %v447 = vld [vmem:[%s393 + $0x4] sm:$0xf]
        %v448 = vld [vmem:[%s393 + $0x8] sm:$0xf]
        %v449 = vld [vmem:[%s393 + $0xc] sm:$0xf]
        %v450 = vld [vmem:[%s393 + $0x10] sm:$0xf]
        %v451 = vld [vmem:[%s393 + $0x14] sm:$0xf]
        %v452 = vld [vmem:[%s393 + $0x18] sm:$0xf]
        %v453 = vld [vmem:[%s393 + $0x1c] sm:$0xf]
        %v454 = vunpack.c.l.bf16 %v446
        %v455 = vunpack.c.l.bf16 %v447
        %v456 = vunpack.c.l.bf16 %v448
        %v457 = vunpack.c.l.bf16 %v449
        %v458 = vunpack.c.l.bf16 %v450
        %v459 = vunpack.c.l.bf16 %v451
        %v460 = vunpack.c.l.bf16 %v452
        %v461 = vunpack.c.l.bf16 %v453
        %vm462 = vcmask 523264
        %v463 = vsel %vm462, %v454, 0.0
        %464 = vadd.xlane.f32.xlu0 %v463
        %v465 = vpop.xlane.xlu0 %464
        %v466 = vsel %vm462, %v455, 0.0
        %467 = vadd.xlane.f32.xlu0 %v466
        %v468 = vpop.xlane.xlu0 %467
        %v469 = vsel %vm462, %v456, 0.0
        %470 = vadd.xlane.f32.xlu0 %v469
        %v471 = vpop.xlane.xlu0 %470
        %v472 = vsel %vm462, %v457, 0.0
        %473 = vadd.xlane.f32.xlu0 %v472
        %v474 = vpop.xlane.xlu0 %473
        %v475 = vsel %vm462, %v458, 0.0
        %476 = vadd.xlane.f32.xlu0 %v475
        %v477 = vpop.xlane.xlu0 %476
        %v478 = vsel %vm462, %v459, 0.0
        %479 = vadd.xlane.f32.xlu0 %v478
        %v480 = vpop.xlane.xlu0 %479
        %v481 = vsel %vm462, %v460, 0.0
        %482 = vadd.xlane.f32.xlu0 %v481
        %v483 = vpop.xlane.xlu0 %482
        %v484 = vsel %vm462, %v461, 0.0
        %485 = vadd.xlane.f32.xlu0 %v484
        %v486 = vpop.xlane.xlu0 %485
        %v487 = vmul.f32 %v465, 0.015625
        %v488 = vmul.f32 %v468, 0.015625
        %v489 = vmul.f32 %v471, 0.015625
        %v490 = vmul.f32 %v474, 0.015625
        %v491 = vmul.f32 %v477, 0.015625
        %v492 = vmul.f32 %v480, 0.015625
        %v493 = vmul.f32 %v483, 0.015625
        %v494 = vmul.f32 %v486, 0.015625
        %v495 = vld [vmem:[#allocation2] sm:$0x3]
        %v496 = vld [vmem:[%s438] sm:$0xff]
        %v497 = vld [vmem:[%s438 + $0x8] sm:$0xff]
        %v498 = vld [vmem:[%s438 + $0x10] sm:$0xff]
        %v499 = vld [vmem:[%s438 + $0x18] sm:$0xff]
        %v508 = vlaneseq
        %v509 = vand.u32 %v508, 127
        %v510 = vlaneseq
        %v511 = vshrl.u32 %v510, 7
        %v512 = vsub.s32 %v509, %v511
        %v513 = vrot.slane %v487, %v512
        %v514 = vadd.s32 %v509, 4294967288
        %v515 = vlaneseq
        %v516 = vshrl.u32 %v515, 7
        %v517 = vsub.s32 %v514, %v516
        %v518 = vrot.slane %v488, %v517
        %vm519 = vcmask 130112
        %v520 = vsel %vm519, %v518, %v513
        %v521 = vadd.s32 %v509, 4294967280
        %v522 = vlaneseq
        %v523 = vshrl.u32 %v522, 7
        %v524 = vsub.s32 %v521, %v523
        %v525 = vrot.slane %v489, %v524
        %vm526 = vcmask 195712
        %v527 = vsel %vm526, %v525, %v520
        %v528 = vadd.s32 %v509, 4294967272
        %v529 = vlaneseq
        %v530 = vshrl.u32 %v529, 7
        %v531 = vsub.s32 %v528, %v530
        %v532 = vrot.slane %v490, %v531
        %vm533 = vcmask 261312
        %v534 = vsel %vm533, %v532, %v527
        %v535 = vlaneseq
        %v536 = vshrl.u32 %v535, 7
        %v537 = vsub.s32 %v509, %v536
        %v538 = vrot.slane %v491, %v537
        %v539 = vlaneseq
        %v540 = vshrl.u32 %v539, 7
        %v541 = vsub.s32 %v514, %v540
        %v542 = vrot.slane %v492, %v541
        %v543 = vsel %vm519, %v542, %v538
        %v544 = vlaneseq
        %v545 = vshrl.u32 %v544, 7
        %v546 = vsub.s32 %v521, %v545
        %v547 = vrot.slane %v493, %v546
        %v548 = vsel %vm526, %v547, %v543
        %v549 = vlaneseq
        %v550 = vshrl.u32 %v549, 7
        %v551 = vsub.s32 %v528, %v550
        %v552 = vrot.slane %v494, %v551
        %v553 = vsel %vm533, %v552, %v548
        %vm554 = vcmask 1041409
        %v555 = vsel %vm554, %v553, %v534
        %vm556 = vcmask 261120
        %v557 = vsel %vm556, %v555, 0
        %559 = vmatprep.subr.mxu0 0.0
        %560 = vmatpush1.msra.mxu0 0.0
        %561 = vmatprep.subr.mxu0 0.0
        %562 = vmatpush1.msra.mxu0 0.0
        %563 = vmatprep.subr.mxu0 0.0
        %564 = vmatpush1.msra.mxu0 0.0
        %565 = vmatprep.subr.mxu0 0.0
        %566 = vmatpush1.msra.mxu0 0.0
        %567 = vmatprep.subr.mxu0 0.0
        %568 = vmatpush1.msra.mxu0 0.0
        %569 = vmatprep.subr.mxu0 0.0
        %570 = vmatpush1.msra.mxu0 0.0
        %571 = vmatprep.subr.mxu0 0.0
        %572 = vmatpush1.msra.mxu0 0.0
        %573 = vmatprep.subr.mxu0 0.0
        %574 = vmatpush1.msra.mxu0 0.0
        %575 = vmatprep.subr.mxu0 0.0
        %576 = vmatpush1.msra.mxu0 0.0
        %577 = vmatprep.subr.mxu0 0.0
        %578 = vmatpush1.msra.mxu0 0.0
        %579 = vmatprep.subr.mxu0 0.0
        %580 = vmatpush1.msra.mxu0 0.0
        %581 = vmatprep.subr.mxu0 0.0
        %582 = vmatpush1.msra.mxu0 0.0
        %583 = vmatprep.subr.mxu0 0.0
        %584 = vmatpush1.msra.mxu0 %v499
        %585 = vmatprep.subr.mxu0 0.0
        %586 = vmatpush1.msra.mxu0 %v498
        %587 = vmatprep.subr.mxu0 0.0
        %588 = vmatpush1.msra.mxu0 %v497
        %589 = vmatprep.subr.mxu0 0.0
        %590 = vmatpush1.msra.mxu0 %v496
        %591 = vmatprep.subr.mxu0 0.0
        %592 = vmatpush2.msra.mxu0 0.0
        %593 = vmatprep.subr.mxu0 0.0
        %594 = vmatpush2.msra.mxu0 0.0
        %595 = vmatprep.subr.mxu0 0.0
        %596 = vmatpush2.msra.mxu0 0.0
        %597 = vmatprep.subr.mxu0 0.0
        %598 = vmatpush2.msra.mxu0 0.0
        %599 = vmatprep.subr.mxu0 0.0
        %600 = vmatpush2.msra.mxu0 0.0
        %601 = vmatprep.subr.mxu0 0.0
        %602 = vmatpush2.msra.mxu0 0.0
        %603 = vmatprep.subr.mxu0 0.0
        %604 = vmatpush2.msra.mxu0 0.0
        %605 = vmatprep.subr.mxu0 0.0
        %606 = vmatpush2.msra.mxu0 0.0
        %607 = vmatprep.subr.mxu0 0.0
        %608 = vmatpush2.msra.mxu0 0.0
        %609 = vmatprep.subr.mxu0 0.0
        %610 = vmatpush2.msra.mxu0 0.0
        %611 = vmatprep.subr.mxu0 0.0
        %612 = vmatpush2.msra.mxu0 0.0
        %613 = vmatprep.subr.mxu0 0.0
        %614 = vmatpush2.msra.mxu0 0.0
        %615 = vmatprep.subr.mxu0 0.0
        %616 = vmatpush2.msra.mxu0 0.0
        %617 = vmatprep.subr.mxu0 0.0
        %618 = vmatpush2.msra.mxu0 0.0
        %619 = vmatprep.subr.mxu0 0.0
        %620 = vmatpush2.msra.mxu0 0.0
        %621 = vmatprep.subr.mxu0 0.0
        %622 = vmatpush2.msra.mxu0 0.0
        %623 = vmatprep.mubr.f32.mxu0 0.0
        %624 = vmatmul.mubr.f32.gmra.mxu0 %v557
        %v625 = vpop.f32.mrf.mxu0
        %v626 = vadd.f32 0.0, %v625
        %v627 = vpop.f32.mrf.mxu0
        %628 = vdwg.mxu0
        %v629 = vadd.f32 %v495, %v626
        %vm630 = vcmask 386048
        %631 = vst.msk [vmem:[#allocation2] sm:$0x3] %vm630, %v629
        %p632 = scmp.eq.s32.totalorder %s27, 1
        // Predicated region
        $region106: #{tpu_custom_call.1} parent=88 // pred_check
          %p633 = pneg %p632
        $region107: #{tpu_custom_call.1} parent=88 // pred_check_branch
          %635 = sbr.rel (%p633) target = $region109
        $region108: #{tpu_custom_call.1} parent=88 // pred_region
          %v636 = vld [vmem:[#allocation2] sm:$0x3]
          %v637 = vld [vmem:[%s2] sm:$0x1]
          %v639 = vlaneseq
          %v640 = vshrl.u32 %v639, 7
          %v641 = vsub.s32 0, %v640
          %v642 = vrot.slane %v637, %v641
          %v644 = vadd.f32 %v636, %v642
          %v645 = vld [vmem:[#allocation4] sm:$0xff]
          %v646 = vld [vmem:[#allocation4 + $0x8] sm:$0xff]
          %v647 = vld [vmem:[#allocation4 + $0x10] sm:$0xff]
          %v648 = vld [vmem:[#allocation4 + $0x18] sm:$0xff]
          %v649 = vld [vmem:[#allocation4 + $0x20] sm:$0xff]
          %v650 = vld [vmem:[#allocation4 + $0x28] sm:$0xff]
          %v651 = vld [vmem:[#allocation4 + $0x30] sm:$0xff]
          %v652 = vld [vmem:[#allocation4 + $0x38] sm:$0xff]
          %v653 = vld [vmem:[#allocation4 + $0x40] sm:$0xff]
          %v654 = vld [vmem:[#allocation4 + $0x48] sm:$0xff]
          %v655 = vld [vmem:[#allocation4 + $0x50] sm:$0xff]
          %v656 = vld [vmem:[#allocation4 + $0x58] sm:$0xff]
          %v657 = vld [vmem:[#allocation4 + $0x60] sm:$0xff]
          %v658 = vld [vmem:[#allocation4 + $0x68] sm:$0xff]
          %v659 = vld [vmem:[#allocation4 + $0x70] sm:$0xff]
          %v660 = vld [vmem:[#allocation4 + $0x78] sm:$0xff]
          %v661 = vld [vmem:[#allocation4 + $0x80] sm:$0xff]
          %v662 = vld [vmem:[#allocation4 + $0x88] sm:$0xff]
          %v663 = vld [vmem:[#allocation4 + $0x90] sm:$0xff]
          %v664 = vld [vmem:[#allocation4 + $0x98] sm:$0xff]
          %v665 = vld [vmem:[#allocation4 + $0xa0] sm:$0xff]
          %v666 = vld [vmem:[#allocation4 + $0xa8] sm:$0xff]
          %v667 = vld [vmem:[#allocation4 + $0xb0] sm:$0xff]
          %v668 = vld [vmem:[#allocation4 + $0xb8] sm:$0xff]
          %v669 = vld [vmem:[%s4] sm:$0xf]
          %v671 = vlaneseq
          %v672 = vshrl.u32 %v671, 7
          %v673 = vsub.s32 0, %v672
          %v674 = vrot.slane %v669, %v673
          %v675 = vlaneseq
          %v676 = vshrl.u32 %v675, 7
          %v677 = vsub.s32 1, %v676
          %v678 = vrot.slane %v669, %v677
          %v679 = vlaneseq
          %v680 = vshrl.u32 %v679, 7
          %v681 = vsub.s32 2, %v680
          %v682 = vrot.slane %v669, %v681
          %v683 = vlaneseq
          %v684 = vshrl.u32 %v683, 7
          %v685 = vsub.s32 3, %v684
          %v686 = vrot.slane %v669, %v685
          %vm691 = vcmask 392192
          %v693 = vsel %vm691, %v644, 0
          %695 = vmatprep.subr.mxu0 0.0
          %696 = vmatpush1.msra.mxu0 0.0
          %697 = vmatprep.subr.mxu0 0.0
          %698 = vmatpush1.msra.mxu0 0.0
          %699 = vmatprep.subr.mxu0 0.0
          %700 = vmatpush1.msra.mxu0 0.0
          %701 = vmatprep.subr.mxu0 0.0
          %702 = vmatpush1.msra.mxu0 0.0
          %703 = vmatprep.subr.mxu0 0.0
          %704 = vmatpush1.msra.mxu0 0.0
          %705 = vmatprep.subr.mxu0 0.0
          %706 = vmatpush1.msra.mxu0 0.0
          %707 = vmatprep.subr.mxu0 0.0
          %708 = vmatpush1.msra.mxu0 0.0
          %709 = vmatprep.subr.mxu0 0.0
          %710 = vmatpush1.msra.mxu0 0.0
          %711 = vmatprep.subr.mxu0 0.0
          %712 = vmatpush1.msra.mxu0 0.0
          %713 = vmatprep.subr.mxu0 0.0
          %714 = vmatpush1.msra.mxu0 0.0
          %715 = vmatprep.subr.mxu0 %v666
          %716 = vmatpush1.msra.mxu0 %v665
          %717 = vmatprep.subr.mxu0 %v662
          %718 = vmatpush1.msra.mxu0 %v661
          %719 = vmatprep.subr.mxu0 %v658
          %720 = vmatpush1.msra.mxu0 %v657
          %721 = vmatprep.subr.mxu0 %v654
          %722 = vmatpush1.msra.mxu0 %v653
          %723 = vmatprep.subr.mxu0 %v650
          %724 = vmatpush1.msra.mxu0 %v649
          %725 = vmatprep.subr.mxu0 %v646
          %726 = vmatpush1.msra.mxu0 %v645
          %727 = vmatprep.subr.mxu0 0.0
          %728 = vmatpush2.msra.mxu0 0.0
          %729 = vmatprep.subr.mxu0 0.0
          %730 = vmatpush2.msra.mxu0 0.0
          %731 = vmatprep.subr.mxu0 0.0
          %732 = vmatpush2.msra.mxu0 0.0
          %733 = vmatprep.subr.mxu0 0.0
          %734 = vmatpush2.msra.mxu0 0.0
          %735 = vmatprep.subr.mxu0 0.0
          %736 = vmatpush2.msra.mxu0 0.0
          %737 = vmatprep.subr.mxu0 0.0
          %738 = vmatpush2.msra.mxu0 0.0
          %739 = vmatprep.subr.mxu0 0.0
          %740 = vmatpush2.msra.mxu0 0.0
          %741 = vmatprep.subr.mxu0 0.0
          %742 = vmatpush2.msra.mxu0 0.0
          %743 = vmatprep.subr.mxu0 0.0
          %744 = vmatpush2.msra.mxu0 0.0
          %745 = vmatprep.subr.mxu0 0.0
          %746 = vmatpush2.msra.mxu0 0.0
          %747 = vmatprep.subr.mxu0 0.0
          %748 = vmatpush2.msra.mxu0 0.0
          %749 = vmatprep.subr.mxu0 0.0
          %750 = vmatpush2.msra.mxu0 0.0
          %751 = vmatprep.subr.mxu0 0.0
          %752 = vmatpush2.msra.mxu0 0.0
          %753 = vmatprep.subr.mxu0 0.0
          %754 = vmatpush2.msra.mxu0 0.0
          %755 = vmatprep.subr.mxu0 0.0
          %756 = vmatpush2.msra.mxu0 0.0
          %757 = vmatprep.subr.mxu0 0.0
          %758 = vmatpush2.msra.mxu0 0.0
          %759 = vmatprep.mubr.f32.mxu0 0.0
          %760 = vmatmul.mubr.f32.gmra.mxu0 %v693
          %v761 = vpop.f32.mrf.mxu0
          %v762 = vadd.f32 %v674, %v761
          %v763 = vpop.f32.mrf.mxu0
          %v764 = vadd.f32 %v678, %v763
          %765 = vdwg.mxu0
          %766 = vmatprep.subr.mxu0 0.0
          %767 = vmatpush1.msra.mxu0 0.0
          %768 = vmatprep.subr.mxu0 0.0
          %769 = vmatpush1.msra.mxu0 0.0
          %770 = vmatprep.subr.mxu0 0.0
          %771 = vmatpush1.msra.mxu0 0.0
          %772 = vmatprep.subr.mxu0 0.0
          %773 = vmatpush1.msra.mxu0 0.0
          %774 = vmatprep.subr.mxu0 0.0
          %775 = vmatpush1.msra.mxu0 0.0
          %776 = vmatprep.subr.mxu0 0.0
          %777 = vmatpush1.msra.mxu0 0.0
          %778 = vmatprep.subr.mxu0 0.0
          %779 = vmatpush1.msra.mxu0 0.0
          %780 = vmatprep.subr.mxu0 0.0
          %781 = vmatpush1.msra.mxu0 0.0
          %782 = vmatprep.subr.mxu0 0.0
          %783 = vmatpush1.msra.mxu0 0.0
          %784 = vmatprep.subr.mxu0 0.0
          %785 = vmatpush1.msra.mxu0 0.0
          %786 = vmatprep.subr.mxu0 %v668
          %787 = vmatpush1.msra.mxu0 %v667
          %788 = vmatprep.subr.mxu0 %v664
          %789 = vmatpush1.msra.mxu0 %v663
          %790 = vmatprep.subr.mxu0 %v660
          %791 = vmatpush1.msra.mxu0 %v659
          %792 = vmatprep.subr.mxu0 %v656
          %793 = vmatpush1.msra.mxu0 %v655
          %794 = vmatprep.subr.mxu0 %v652
          %795 = vmatpush1.msra.mxu0 %v651
          %796 = vmatprep.subr.mxu0 %v648
          %797 = vmatpush1.msra.mxu0 %v647
          %798 = vmatprep.subr.mxu0 0.0
          %799 = vmatpush2.msra.mxu0 0.0
          %800 = vmatprep.subr.mxu0 0.0
          %801 = vmatpush2.msra.mxu0 0.0
          %802 = vmatprep.subr.mxu0 0.0
          %803 = vmatpush2.msra.mxu0 0.0
          %804 = vmatprep.subr.mxu0 0.0
          %805 = vmatpush2.msra.mxu0 0.0
          %806 = vmatprep.subr.mxu0 0.0
          %807 = vmatpush2.msra.mxu0 0.0
          %808 = vmatprep.subr.mxu0 0.0
          %809 = vmatpush2.msra.mxu0 0.0
          %810 = vmatprep.subr.mxu0 0.0
          %811 = vmatpush2.msra.mxu0 0.0
          %812 = vmatprep.subr.mxu0 0.0
          %813 = vmatpush2.msra.mxu0 0.0
          %814 = vmatprep.subr.mxu0 0.0
          %815 = vmatpush2.msra.mxu0 0.0
          %816 = vmatprep.subr.mxu0 0.0
          %817 = vmatpush2.msra.mxu0 0.0
          %818 = vmatprep.subr.mxu0 0.0
          %819 = vmatpush2.msra.mxu0 0.0
          %820 = vmatprep.subr.mxu0 0.0
          %821 = vmatpush2.msra.mxu0 0.0
          %822 = vmatprep.subr.mxu0 0.0
          %823 = vmatpush2.msra.mxu0 0.0
          %824 = vmatprep.subr.mxu0 0.0
          %825 = vmatpush2.msra.mxu0 0.0
          %826 = vmatprep.subr.mxu0 0.0
          %827 = vmatpush2.msra.mxu0 0.0
          %828 = vmatprep.subr.mxu0 0.0
          %829 = vmatpush2.msra.mxu0 0.0
          %830 = vmatprep.mubr.f32.mxu0 0.0
          %831 = vmatmul.mubr.f32.gmra.mxu0 %v693
          %v832 = vpop.f32.mrf.mxu0
          %v833 = vadd.f32 %v682, %v832
          %v834 = vpop.f32.mrf.mxu0
          %v835 = vadd.f32 %v686, %v834
          %836 = vdwg.mxu0
          %v837 = vmax.f32 %v762, 0.0
          %v838 = vmax.f32 %v764, 0.0
          %v839 = vmax.f32 %v833, 0.0
          %v840 = vmax.f32 %v835, 0.0
          %v841 = vld [vmem:[%s5] sm:$0xff]
          %v842 = vld [vmem:[%s5 + $0x8] sm:$0xff]
          %v843 = vld [vmem:[%s5 + $0x10] sm:$0xff]
          %v844 = vld [vmem:[%s5 + $0x18] sm:$0xff]
          %v845 = vld [vmem:[%s5 + $0x20] sm:$0xff]
          %v846 = vld [vmem:[%s5 + $0x28] sm:$0xff]
          %v847 = vld [vmem:[#allocation7] sm:$0xff]
          %v848 = vld [vmem:[#allocation7 + $0x8] sm:$0xff]
          %v849 = vld [vmem:[#allocation7 + $0x10] sm:$0xff]
          %v850 = vld [vmem:[#allocation7 + $0x18] sm:$0xff]
          %v851 = vld [vmem:[#allocation7 + $0x20] sm:$0xff]
          %v852 = vld [vmem:[#allocation7 + $0x28] sm:$0xff]
          %v853 = vld [vmem:[#allocation7 + $0x30] sm:$0xff]
          %v854 = vld [vmem:[#allocation7 + $0x38] sm:$0xff]
          %v855 = vld [vmem:[#allocation7 + $0x40] sm:$0xff]
          %v856 = vld [vmem:[#allocation7 + $0x48] sm:$0xff]
          %v857 = vld [vmem:[#allocation7 + $0x50] sm:$0xff]
          %v858 = vld [vmem:[#allocation7 + $0x58] sm:$0xff]
          %v859 = vld [vmem:[#allocation7 + $0x60] sm:$0xff]
          %v860 = vld [vmem:[#allocation7 + $0x68] sm:$0xff]
          %v861 = vld [vmem:[#allocation7 + $0x70] sm:$0xff]
          %v862 = vld [vmem:[#allocation7 + $0x78] sm:$0xff]
          %v863 = vld [vmem:[#allocation7 + $0x80] sm:$0xff]
          %v864 = vld [vmem:[#allocation7 + $0x88] sm:$0xff]
          %v865 = vld [vmem:[#allocation7 + $0x90] sm:$0xff]
          %v866 = vld [vmem:[#allocation7 + $0x98] sm:$0xff]
          %v867 = vld [vmem:[#allocation7 + $0xa0] sm:$0xff]
          %v868 = vld [vmem:[#allocation7 + $0xa8] sm:$0xff]
          %v869 = vld [vmem:[#allocation7 + $0xb0] sm:$0xff]
          %v870 = vld [vmem:[#allocation7 + $0xb8] sm:$0xff]
          %v871 = vld [vmem:[#allocation7 + $0xc0] sm:$0xff]
          %v872 = vld [vmem:[#allocation7 + $0xc8] sm:$0xff]
          %v873 = vld [vmem:[#allocation7 + $0xd0] sm:$0xff]
          %v874 = vld [vmem:[#allocation7 + $0xd8] sm:$0xff]
          %v875 = vld [vmem:[#allocation7 + $0xe0] sm:$0xff]
          %v876 = vld [vmem:[#allocation7 + $0xe8] sm:$0xff]
          %v877 = vld [vmem:[#allocation7 + $0xf0] sm:$0xff]
          %v878 = vld [vmem:[#allocation7 + $0xf8] sm:$0xff]
          %v879 = vld [vmem:[#allocation7 + $0x100] sm:$0xff]
          %v880 = vld [vmem:[#allocation7 + $0x108] sm:$0xff]
          %v881 = vld [vmem:[#allocation7 + $0x110] sm:$0xff]
          %v882 = vld [vmem:[#allocation7 + $0x118] sm:$0xff]
          %v883 = vld [vmem:[#allocation7 + $0x120] sm:$0xff]
          %v884 = vld [vmem:[#allocation7 + $0x128] sm:$0xff]
          %v885 = vld [vmem:[#allocation7 + $0x130] sm:$0xff]
          %v886 = vld [vmem:[#allocation7 + $0x138] sm:$0xff]
          %v887 = vld [vmem:[#allocation7 + $0x140] sm:$0xff]
          %v888 = vld [vmem:[#allocation7 + $0x148] sm:$0xff]
          %v889 = vld [vmem:[#allocation7 + $0x150] sm:$0xff]
          %v890 = vld [vmem:[#allocation7 + $0x158] sm:$0xff]
          %v891 = vld [vmem:[#allocation7 + $0x160] sm:$0xff]
          %v892 = vld [vmem:[#allocation7 + $0x168] sm:$0xff]
          %v893 = vld [vmem:[#allocation7 + $0x170] sm:$0xff]
          %v894 = vld [vmem:[#allocation7 + $0x178] sm:$0xff]
          %v895 = vld [vmem:[#allocation7 + $0x180] sm:$0xff]
          %v896 = vld [vmem:[#allocation7 + $0x188] sm:$0xff]
          %v897 = vld [vmem:[#allocation7 + $0x190] sm:$0xff]
          %v898 = vld [vmem:[#allocation7 + $0x198] sm:$0xff]
          %v899 = vld [vmem:[#allocation7 + $0x1a0] sm:$0xff]
          %v900 = vld [vmem:[#allocation7 + $0x1a8] sm:$0xff]
          %v901 = vld [vmem:[#allocation7 + $0x1b0] sm:$0xff]
          %v902 = vld [vmem:[#allocation7 + $0x1b8] sm:$0xff]
          %v903 = vld [vmem:[#allocation7 + $0x1c0] sm:$0xff]
          %v904 = vld [vmem:[#allocation7 + $0x1c8] sm:$0xff]
          %v905 = vld [vmem:[#allocation7 + $0x1d0] sm:$0xff]
          %v906 = vld [vmem:[#allocation7 + $0x1d8] sm:$0xff]
          %v907 = vld [vmem:[#allocation7 + $0x1e0] sm:$0xff]
          %v908 = vld [vmem:[#allocation7 + $0x1e8] sm:$0xff]
          %v909 = vld [vmem:[#allocation7 + $0x1f0] sm:$0xff]
          %v910 = vld [vmem:[#allocation7 + $0x1f8] sm:$0xff]
          %911 = vmatprep.subr.mxu0 0.0
          %912 = vmatpush1.msra.mxu0 %v862
          %913 = vmatprep.subr.mxu0 0.0
          %914 = vmatpush1.msra.mxu0 %v861
          %915 = vmatprep.subr.mxu0 0.0
          %916 = vmatpush1.msra.mxu0 %v860
          %917 = vmatprep.subr.mxu0 0.0
          %918 = vmatpush1.msra.mxu0 %v859
          %919 = vmatprep.subr.mxu0 0.0
          %920 = vmatpush1.msra.mxu0 %v858
          %921 = vmatprep.subr.mxu0 0.0
          %922 = vmatpush1.msra.mxu0 %v857
          %923 = vmatprep.subr.mxu0 0.0
          %924 = vmatpush1.msra.mxu0 %v856
          %925 = vmatprep.subr.mxu0 0.0
          %926 = vmatpush1.msra.mxu0 %v855
          %927 = vmatprep.subr.mxu0 0.0
          %928 = vmatpush1.msra.mxu0 %v854
          %929 = vmatprep.subr.mxu0 0.0
          %930 = vmatpush1.msra.mxu0 %v853
          %931 = vmatprep.subr.mxu0 0.0
          %932 = vmatpush1.msra.mxu0 %v852
          %933 = vmatprep.subr.mxu0 0.0
          %934 = vmatpush1.msra.mxu0 %v851
          %935 = vmatprep.subr.mxu0 0.0
          %936 = vmatpush1.msra.mxu0 %v850
          %937 = vmatprep.subr.mxu0 0.0
          %938 = vmatpush1.msra.mxu0 %v849
          %939 = vmatprep.subr.mxu0 0.0
          %940 = vmatpush1.msra.mxu0 %v848
          %941 = vmatprep.subr.mxu0 0.0
          %942 = vmatpush1.msra.mxu0 %v847
          %943 = vmatprep.subr.mxu0 0.0
          %944 = vmatpush2.msra.mxu0 %v878
          %945 = vmatprep.subr.mxu0 0.0
          %946 = vmatpush2.msra.mxu0 %v877
          %947 = vmatprep.subr.mxu0 0.0
          %948 = vmatpush2.msra.mxu0 %v876
          %949 = vmatprep.subr.mxu0 0.0
          %950 = vmatpush2.msra.mxu0 %v875
          %951 = vmatprep.subr.mxu0 0.0
          %952 = vmatpush2.msra.mxu0 %v874
          %953 = vmatprep.subr.mxu0 0.0
          %954 = vmatpush2.msra.mxu0 %v873
          %955 = vmatprep.subr.mxu0 0.0
          %956 = vmatpush2.msra.mxu0 %v872
          %957 = vmatprep.subr.mxu0 0.0
          %958 = vmatpush2.msra.mxu0 %v871
          %959 = vmatprep.subr.mxu0 0.0
          %960 = vmatpush2.msra.mxu0 %v870
          %961 = vmatprep.subr.mxu0 0.0
          %962 = vmatpush2.msra.mxu0 %v869
          %963 = vmatprep.subr.mxu0 0.0
          %964 = vmatpush2.msra.mxu0 %v868
          %965 = vmatprep.subr.mxu0 0.0
          %966 = vmatpush2.msra.mxu0 %v867
          %967 = vmatprep.subr.mxu0 0.0
          %968 = vmatpush2.msra.mxu0 %v866
          %969 = vmatprep.subr.mxu0 0.0
          %970 = vmatpush2.msra.mxu0 %v865
          %971 = vmatprep.subr.mxu0 0.0
          %972 = vmatpush2.msra.mxu0 %v864
          %973 = vmatprep.subr.mxu0 0.0
          %974 = vmatpush2.msra.mxu0 %v863
          %975 = vmatprep.mubr.f32.mxu0 %v838
          %976 = vmatmul.mubr.f32.gmra.mxu0 %v837
          %v977 = vpop.f32.mrf.mxu0
          %v978 = vadd.f32 0.0, %v977
          %v979 = vpop.f32.mrf.mxu0
          %980 = vdwg.mxu0
          %981 = vmatprep.subr.mxu0 0.0
          %982 = vmatpush1.msra.mxu0 %v894
          %983 = vmatprep.subr.mxu0 0.0
          %984 = vmatpush1.msra.mxu0 %v893
          %985 = vmatprep.subr.mxu0 0.0
          %986 = vmatpush1.msra.mxu0 %v892
          %987 = vmatprep.subr.mxu0 0.0
          %988 = vmatpush1.msra.mxu0 %v891
          %989 = vmatprep.subr.mxu0 0.0
          %990 = vmatpush1.msra.mxu0 %v890
          %991 = vmatprep.subr.mxu0 0.0
          %992 = vmatpush1.msra.mxu0 %v889
          %993 = vmatprep.subr.mxu0 0.0
          %994 = vmatpush1.msra.mxu0 %v888
          %995 = vmatprep.subr.mxu0 0.0
          %996 = vmatpush1.msra.mxu0 %v887
          %997 = vmatprep.subr.mxu0 0.0
          %998 = vmatpush1.msra.mxu0 %v886
          %999 = vmatprep.subr.mxu0 0.0
          %1000 = vmatpush1.msra.mxu0 %v885
          %1001 = vmatprep.subr.mxu0 0.0
          %1002 = vmatpush1.msra.mxu0 %v884
          %1003 = vmatprep.subr.mxu0 0.0
          %1004 = vmatpush1.msra.mxu0 %v883
          %1005 = vmatprep.subr.mxu0 0.0
          %1006 = vmatpush1.msra.mxu0 %v882
          %1007 = vmatprep.subr.mxu0 0.0
          %1008 = vmatpush1.msra.mxu0 %v881
          %1009 = vmatprep.subr.mxu0 0.0
          %1010 = vmatpush1.msra.mxu0 %v880
          %1011 = vmatprep.subr.mxu0 0.0
          %1012 = vmatpush1.msra.mxu0 %v879
          %1013 = vmatprep.subr.mxu0 0.0
          %1014 = vmatpush2.msra.mxu0 %v910
          %1015 = vmatprep.subr.mxu0 0.0
          %1016 = vmatpush2.msra.mxu0 %v909
          %1017 = vmatprep.subr.mxu0 0.0
          %1018 = vmatpush2.msra.mxu0 %v908
          %1019 = vmatprep.subr.mxu0 0.0
          %1020 = vmatpush2.msra.mxu0 %v907
          %1021 = vmatprep.subr.mxu0 0.0
          %1022 = vmatpush2.msra.mxu0 %v906
          %1023 = vmatprep.subr.mxu0 0.0
          %1024 = vmatpush2.msra.mxu0 %v905
          %1025 = vmatprep.subr.mxu0 0.0
          %1026 = vmatpush2.msra.mxu0 %v904
          %1027 = vmatprep.subr.mxu0 0.0
          %1028 = vmatpush2.msra.mxu0 %v903
          %1029 = vmatprep.subr.mxu0 0.0
          %1030 = vmatpush2.msra.mxu0 %v902
          %1031 = vmatprep.subr.mxu0 0.0
          %1032 = vmatpush2.msra.mxu0 %v901
          %1033 = vmatprep.subr.mxu0 0.0
          %1034 = vmatpush2.msra.mxu0 %v900
          %1035 = vmatprep.subr.mxu0 0.0
          %1036 = vmatpush2.msra.mxu0 %v899
          %1037 = vmatprep.subr.mxu0 0.0
          %1038 = vmatpush2.msra.mxu0 %v898
          %1039 = vmatprep.subr.mxu0 0.0
          %1040 = vmatpush2.msra.mxu0 %v897
          %1041 = vmatprep.subr.mxu0 0.0
          %1042 = vmatpush2.msra.mxu0 %v896
          %1043 = vmatprep.subr.mxu0 0.0
          %1044 = vmatpush2.msra.mxu0 %v895
          %1045 = vmatprep.mubr.f32.mxu0 %v840
          %1046 = vmatmul.mubr.f32.gmra.mxu0 %v839
          %v1047 = vpop.f32.mrf.mxu0
          %v1048 = vadd.f32 %v978, %v1047
          %v1049 = vpop.f32.mrf.mxu0
          %1050 = vdwg.mxu0
          %1051 = vmatprep.subr.mxu0 0.0
          %1052 = vmatpush1.msra.mxu0 0.0
          %1053 = vmatprep.subr.mxu0 0.0
          %1054 = vmatpush1.msra.mxu0 0.0
          %1055 = vmatprep.subr.mxu0 0.0
          %1056 = vmatpush1.msra.mxu0 0.0
          %1057 = vmatprep.subr.mxu0 0.0
          %1058 = vmatpush1.msra.mxu0 0.0
          %1059 = vmatprep.subr.mxu0 0.0
          %1060 = vmatpush1.msra.mxu0 0.0
          %1061 = vmatprep.subr.mxu0 0.0
          %1062 = vmatpush1.msra.mxu0 0.0
          %1063 = vmatprep.subr.mxu0 0.0
          %1064 = vmatpush1.msra.mxu0 0.0
          %1065 = vmatprep.subr.mxu0 0.0
          %1066 = vmatpush1.msra.mxu0 0.0
          %1067 = vmatprep.subr.mxu0 0.0
          %1068 = vmatpush1.msra.mxu0 0.0
          %1069 = vmatprep.subr.mxu0 0.0
          %1070 = vmatpush1.msra.mxu0 0.0
          %1071 = vmatprep.subr.mxu0 0.0
          %1072 = vmatpush1.msra.mxu0 %v846
          %1073 = vmatprep.subr.mxu0 0.0
          %1074 = vmatpush1.msra.mxu0 %v845
          %1075 = vmatprep.subr.mxu0 0.0
          %1076 = vmatpush1.msra.mxu0 %v844
          %1077 = vmatprep.subr.mxu0 0.0
          %1078 = vmatpush1.msra.mxu0 %v843
          %1079 = vmatprep.subr.mxu0 0.0
          %1080 = vmatpush1.msra.mxu0 %v842
          %1081 = vmatprep.subr.mxu0 0.0
          %1082 = vmatpush1.msra.mxu0 %v841
          %1083 = vmatprep.subr.mxu0 0.0
          %1084 = vmatpush2.msra.mxu0 0.0
          %1085 = vmatprep.subr.mxu0 0.0
          %1086 = vmatpush2.msra.mxu0 0.0
          %1087 = vmatprep.subr.mxu0 0.0
          %1088 = vmatpush2.msra.mxu0 0.0
          %1089 = vmatprep.subr.mxu0 0.0
          %1090 = vmatpush2.msra.mxu0 0.0
          %1091 = vmatprep.subr.mxu0 0.0
          %1092 = vmatpush2.msra.mxu0 0.0
          %1093 = vmatprep.subr.mxu0 0.0
          %1094 = vmatpush2.msra.mxu0 0.0
          %1095 = vmatprep.subr.mxu0 0.0
          %1096 = vmatpush2.msra.mxu0 0.0
          %1097 = vmatprep.subr.mxu0 0.0
          %1098 = vmatpush2.msra.mxu0 0.0
          %1099 = vmatprep.subr.mxu0 0.0
          %1100 = vmatpush2.msra.mxu0 0.0
          %1101 = vmatprep.subr.mxu0 0.0
          %1102 = vmatpush2.msra.mxu0 0.0
          %1103 = vmatprep.subr.mxu0 0.0
          %1104 = vmatpush2.msra.mxu0 0.0
          %1105 = vmatprep.subr.mxu0 0.0
          %1106 = vmatpush2.msra.mxu0 0.0
          %1107 = vmatprep.subr.mxu0 0.0
          %1108 = vmatpush2.msra.mxu0 0.0
          %1109 = vmatprep.subr.mxu0 0.0
          %1110 = vmatpush2.msra.mxu0 0.0
          %1111 = vmatprep.subr.mxu0 0.0
          %1112 = vmatpush2.msra.mxu0 0.0
          %1113 = vmatprep.subr.mxu0 0.0
          %1114 = vmatpush2.msra.mxu0 0.0
          %1115 = vmatprep.mubr.f32.mxu0 0.0
          %1116 = vmatmul.mubr.f32.gmra.mxu0 %v693
          %v1117 = vpop.f32.mrf.mxu0
          %v1118 = vadd.f32 %v1048, %v1117
          %v1119 = vpop.f32.mrf.mxu0
          %1120 = vdwg.mxu0
          %v1121 = vld [vmem:[%s7] sm:$0x1]
          %v1123 = vlaneseq
          %v1124 = vshrl.u32 %v1123, 7
          %v1125 = vsub.s32 0, %v1124
          %v1126 = vrot.slane %v1121, %v1125
          %v1128 = vadd.f32 %v1118, %v1126
          %1129 = vst [vmem:[#allocation9] sm:$0x3] %v1128
        $region109: #{tpu_custom_call.1} parent=88 // pred_fallthru
          _
        // Predicated region
        $region110: #{tpu_custom_call.1} parent=88 // pred_check
          %p1130 = pneg %p232
        $region111: #{tpu_custom_call.1} parent=88 // pred_check_branch
          %1132 = sbr.rel (%p1130) target = $region113
        $region112: #{tpu_custom_call.1} parent=88 // pred_region
          %s1134 = ssub.s32 32, 32
          %1135 = vsyncadd [#allocation6], %s1134
          %s1136 = smul.addr %s26, 32
          %s1137 = scalar_lea.hbm %s8, %s1136
          %s1139 = sshll.u32 [#allocation9], 4
          %s1140 = int_to_ptr.vmem [resolvable:$true] %s1139
          %1142 = dma.vmem_to_hbm [thread:$0]  %s1140, 32, %s1137, [#allocation6]
        $region113: #{tpu_custom_call.1} parent=88 // pred_fallthru
          _
        // Predicated region
        $region114: #{tpu_custom_call.1} parent=88 // pred_check
          %p1143 = pneg %p232
        $region115: #{tpu_custom_call.1} parent=88 // pred_check_branch
          %1145 = sbr.rel (%p1143) target = $region117
        $region116: #{tpu_custom_call.1} parent=88 // pred_region
          %1146 = dma.done [#allocation6], 32
        $region117: #{tpu_custom_call.1} parent=88 // pred_fallthru
          _
      $region89: #{tpu_custom_call.1} parent=5 // pred_fallthru
        _
      %p1147 = scmp.le.s32.totalorder 2, %s17
      // Predicated region
      $region118: #{tpu_custom_call.1} parent=5 // pred_check
        %p1148 = pneg %p1147
      $region119: #{tpu_custom_call.1} parent=5 // pred_check_branch
        %1150 = sbr.rel (%p1148) target = $region121
      $region120: #{tpu_custom_call.1} parent=5 // pred_region
        %s1151 = ssub.s32 %s17, 2
      $region121: #{tpu_custom_call.1} parent=5 // pred_fallthru
        _
    $region6: #{tpu_custom_call.1} parent=1 // loop_footer
      %s21 = sadd.s32 1, %s17
    $region7: #{tpu_custom_call.1} parent=1 // loop_footer_branch
      %16 = sbr.rel target = $region3
    $region8: #{tpu_custom_call.1} parent=1 // loop_exit
      _
    %1152 = vsyncpa [#allocation5], 1
    %s1153 = scalar_lea.sflag [#allocation5], 1
    %1154 = vsyncpa %s1153, 1
    %1155 = vsyncpa [#allocation8], 1
    %1156 = vsyncpa [#allocation6], 1
    %s1157 = scalar_lea.sflag [#allocation6], 1
    %1158 = vsyncpa %s1157, 1

</llo_original>
